<compile_context>
chip_gen: v5e
topology: v5e:2x2
jax: 0.10.0
libtpu: 0.0.40
codegen_flags: <defaults>
</compile_context>

<pallas_src>
import functools

import jax
import jax.numpy as jnp
from jax.experimental import pallas as pl
from jax.experimental.pallas import tpu as pltpu


def _round_up(x: int, m: int) -> int:
    return (x + m - 1) // m * m


def _pick_tm(rows: int, limit: int) -> int:
    """Largest multiple-of-8 tile <= limit dividing `rows` (rows % 8 == 0),
    preferring >= 2 grid steps so both v7x TensorCores get work."""
    cap = min(limit, rows)
    if rows >= 16:
        cap = min(cap, rows // 2)
    cap = max(cap - cap % 8, 8)
    for t in range(cap, 7, -8):
        if rows % t == 0:
            return t
    return 8


def _pick_tile(n: int, align: int, limit: int) -> int:
    """Largest multiple of `align` <= limit dividing n (n % align == 0)."""
    best = align
    t = align
    while t <= min(limit, n):
        if n % t == 0:
            best = t
        t += align
    return best


_MXU_DTYPES = {None: None, "float32": jnp.float32, "bfloat16": jnp.bfloat16}


# ---------------------------------------------------------------------------
# Kernels
# ---------------------------------------------------------------------------

def _nonneg_linear_resident_kernel(x_ref, w_ref, b_ref, o_ref, *, mxu_dtype):
    """Grid = (M_tiles,). W/bias blocks are resident (constant index_map);
    x rows stream in; output tile is written directly (no accumulator)."""
    w = jnp.maximum(w_ref[...], 0.0)          # relu(W) — module semantics
    x = x_ref[...]
    if mxu_dtype is not None:
        w = w.astype(mxu_dtype)
        x = x.astype(mxu_dtype)
    acc = jnp.dot(x, w, preferred_element_type=jnp.float32)
    o_ref[...] = (acc + b_ref[...].astype(jnp.float32)).astype(o_ref.dtype)


def _nonneg_linear_tiled_kernel(x_ref, w_ref, b_ref, o_ref, acc_ref, *, mxu_dtype):
    """Grid = (M_tiles, N_tiles, K_tiles); reduction axis last."""
    k = pl.program_id(2)

    @pl.when(k == 0)
    def _init():
        acc_ref[...] = jnp.zeros_like(acc_ref)

    w = jnp.maximum(w_ref[...], 0.0)
    x = x_ref[...]
    if mxu_dtype is not None:
        w = w.astype(mxu_dtype)
        x = x.astype(mxu_dtype)
    acc_ref[...] += jnp.dot(x, w, preferred_element_type=jnp.float32)

    @pl.when(k == pl.num_programs(2) - 1)
    def _finalize():
        o_ref[...] = (acc_ref[...] + b_ref[...].astype(jnp.float32)).astype(o_ref.dtype)


# ---------------------------------------------------------------------------
# One-time parameter prep (call once at weight-load time, NOT per forward)
# ---------------------------------------------------------------------------

def prepare_params(weight: jax.Array, bias: jax.Array | None = None):
    """weight: (Out, In) [PyTorch layout], bias: (Out,) or None.
    Returns (w_prepped: (In, Np), b_prepped: (1, Np)) with Np = round_up(Out, 128).
    relu stays inside the kernel, so the kernel implements the module forward;
    relu(0) = 0 makes the zero Out-padding exact."""
    Out, In = weight.shape
    Np = _round_up(Out, 128)
    w_t = jnp.transpose(weight)                                   # (In, Out)
    w_p = w_t if Np == Out else jnp.pad(w_t, ((0, 0), (0, Np - Out)))
    if bias is None:
        b_p = jnp.zeros((1, Np), dtype=weight.dtype)
    else:
        b_p = bias.reshape(1, Out)
        if Np != Out:
            b_p = jnp.pad(b_p, ((0, 0), (0, Np - Out)))
    return w_p, b_p


# ---------------------------------------------------------------------------
# Forward
# ---------------------------------------------------------------------------

@functools.partial(jax.jit,
                   static_argnames=("out_features", "mxu_dtype", "vmem_budget_bytes"))
def nonneg_linear(x: jax.Array, w_prepped: jax.Array, b_prepped: jax.Array, *,
                  out_features: int, mxu_dtype: str | None = None,
                  vmem_budget_bytes: int = 12 * 1024 * 1024) -> jax.Array:
    """x: (B, In); w_prepped: (In, Np); b_prepped: (1, Np) from prepare_params."""
    B, In = x.shape
    In_w, Np = w_prepped.shape
    assert In == In_w, "in_features mismatch"
    Out = out_features
    assert Out <= Np
    mdt = _MXU_DTYPES[mxu_dtype]

    # --- M tiling: avoid padding x along M unless B is not a multiple of 8.
    if B % 8 == 0:
        Bp, x_p = B, x
    else:
        Bp = _round_up(B, 8)
        x_p = jnp.pad(x, ((0, Bp - B), (0, 0)))

    # --- VMEM estimate for the resident-weight path:
    #     resident W + bias, plus double-buffered streamed x and out tiles.
    x_item = jnp.dtype(x.dtype).itemsize
    w_bytes = In * Np * jnp.dtype(w_prepped.dtype).itemsize \
        + Np * jnp.dtype(b_prepped.dtype).itemsize
    per_row = 2 * (In + Np) * x_item
    tm_limit = (vmem_budget_bytes - w_bytes) // per_row if w_bytes < vmem_budget_bytes else 0

    if tm_limit >= 8:
        # ---------------- Fast path: weight resident, 1-D grid over batch.
        tm = _pick_tm(Bp, min(512, int(tm_limit)))
        out_padded = pl.pallas_call(
            functools.partial(_nonneg_linear_resident_kernel, mxu_dtype=mdt),
            out_shape=jax.ShapeDtypeStruct((Bp, Np), x.dtype),
            grid=(Bp // tm,),
            in_specs=[
                # x: stream rows; K block == full dim (no K padding of x needed).
                pl.BlockSpec((tm, In), lambda i: (i, 0)),
                # W: single block, constant index -> DMA'd into VMEM once.
                pl.BlockSpec((In, Np), lambda i: (0, 0)),
                # bias: single lane-dense block, resident.
                pl.BlockSpec((1, Np), lambda i: (0, 0)),
            ],
            out_specs=pl.BlockSpec((tm, Np), lambda i: (i, 0)),
            compiler_params=pltpu.CompilerParams(
                dimension_semantics=("parallel",)),
        )(x_p, w_prepped, b_prepped)
    else:
        # ---------------- Tiled fallback for weights too large for VMEM.
        Kp = _round_up(In, 128)
        tk = _pick_tile(Kp, 128, 1024)
        tn = _pick_tile(Np, 128, 512)
        tm = _pick_tm(Bp, 256)
        x_k = x_p if Kp == In else jnp.pad(x_p, ((0, 0), (0, Kp - In)))
        w_k = w_prepped if Kp == In else jnp.pad(w_prepped, ((0, Kp - In), (0, 0)))
        out_padded = pl.pallas_call(
            functools.partial(_nonneg_linear_tiled_kernel, mxu_dtype=mdt),
            out_shape=jax.ShapeDtypeStruct((Bp, Np), x.dtype),
            grid=(Bp // tm, Np // tn, Kp // tk),
            in_specs=[
                pl.BlockSpec((tm, tk), lambda i, j, k: (i, k)),
                pl.BlockSpec((tk, tn), lambda i, j, k: (k, j)),
                pl.BlockSpec((1, tn), lambda i, j, k: (0, j)),
            ],
            out_specs=pl.BlockSpec((tm, tn), lambda i, j, k: (i, j)),
            scratch_shapes=[pltpu.VMEM((tm, tn), jnp.float32)],
            compiler_params=pltpu.CompilerParams(
                dimension_semantics=("parallel", "parallel", "arbitrary")),
        )(x_k, w_k, b_prepped)

    if Bp == B and Np == Out:
        return out_padded
    return out_padded[:B, :Out]


# ---------------------------------------------------------------------------
# Self-test
# ---------------------------------------------------------------------------

if __name__ == "__main__":
    # Module config (synthetic, deterministic init — no checkpoint load).
    in_features = 32
    out_features = 16
    batch = 8

    key = jax.random.PRNGKey(0)
    kx, kw, kb = jax.random.split(key, 3)

    x = jax.random.normal(kx, (batch, in_features), dtype=jnp.float32)
    # weight has both signs so relu() inside the kernel actually matters.
    weight = jax.random.normal(kw, (out_features, in_features), dtype=jnp.float32)
    bias = jax.random.normal(kb, (out_features,), dtype=jnp.float32)
    # normalization_multiplier exists as a parameter but is unused in forward().
    normalization_multiplier = jnp.ones((1,), dtype=jnp.float32)  # noqa: F841

    # One-time weight prep (at "weight load" time, outside the per-call jit).
    w_p, b_p = prepare_params(weight, bias)

    # Exact f32 path.
    y = nonneg_linear(x, w_p, b_p, out_features=out_features)
    jax.block_until_ready(y)

    y_ref = x @ jnp.maximum(weight, 0.0).T + bias
    assert y.shape == (batch, out_features)
    assert jnp.allclose(y, y_ref, atol=1e-5, rtol=1e-5), "mismatch vs reference (f32)"

    # Optional bf16 MXU feed (f32 accumulation) — slightly looser tolerance.
    y_bf16 = nonneg_linear(x, w_p, b_p, out_features=out_features, mxu_dtype="bfloat16")
    jax.block_until_ready(y_bf16)
    assert jnp.allclose(y_bf16, y_ref, atol=1e-1, rtol=5e-2), "mismatch vs reference (bf16)"

    print("KERNEL_OK")
</pallas_src>

<mosaic_0001>
module attributes {stable_mosaic.version = 11 : i64} {
  func.func @_nonneg_linear_resident_kernel(%arg0: i32, %arg1: memref<8x32xf32, #tpu.memory_space<vmem>>, %arg2: memref<32x128xf32, #tpu.memory_space<vmem>>, %arg3: memref<1x128xf32, #tpu.memory_space<vmem>>, %arg4: memref<8x128xf32, #tpu.memory_space<vmem>>) attributes {dimension_semantics = [#tpu.dimension_semantics<parallel>], iteration_bounds = array<i64: 1>, scalar_prefetch = 0 : i64, scratch_operands = 0 : i64, tpu.core_type = #tpu.core_type<tc>, window_params = [{transform_indices = @transform_0, window_bounds = array<i64: 8, 32>}, {pipeline_mode = #tpu.pipeline_mode<synchronous>, transform_indices = @transform_1, window_bounds = array<i64: 32, 128>}, {pipeline_mode = #tpu.pipeline_mode<synchronous>, transform_indices = @transform_2, window_bounds = array<i64: 1, 128>}, {transform_indices = @transform_3, window_bounds = array<i64: 8, 128>}]} {
    %c0 = arith.constant 0 : index
    %c0_0 = arith.constant 0 : index
    %0 = vector.load %arg2[%c0, %c0_0] : memref<32x128xf32, #tpu.memory_space<vmem>>, vector<32x128xf32>
    %cst = arith.constant 0.000000e+00 : f32
    %1 = vector.broadcast %cst : f32 to vector<32x128xf32>
    %2 = arith.maximumf %0, %1 : vector<32x128xf32>
    %c0_1 = arith.constant 0 : index
    %c0_2 = arith.constant 0 : index
    %3 = vector.load %arg1[%c0_1, %c0_2] : memref<8x32xf32, #tpu.memory_space<vmem>>, vector<8x32xf32>
    %cst_3 = arith.constant dense<0.000000e+00> : vector<8x128xf32>
    %4 = tpu.matmul %3, %2, %cst_3 {dimension_numbers = #tpu.dot_dimension_numbers<[1], [0], [0], [1], [0, 0, 1, 1], [], []>} : vector<8x32xf32>, vector<32x128xf32>, vector<8x128xf32> -> vector<8x128xf32>
    %c0_4 = arith.constant 0 : index
    %c0_5 = arith.constant 0 : index
    %5 = vector.load %arg3[%c0_4, %c0_5] : memref<1x128xf32, #tpu.memory_space<vmem>>, vector<1x128xf32>
    %6 = vector.broadcast %5 : vector<1x128xf32> to vector<8x128xf32>
    %7 = arith.addf %4, %6 : vector<8x128xf32>
    %c0_6 = arith.constant 0 : index
    %c0_7 = arith.constant 0 : index
    %8 = vector.load %arg4[%c0_6, %c0_7] : memref<8x128xf32, #tpu.memory_space<vmem>>, vector<8x128xf32>
    tpu.vector_store %arg4[%c0_6, %c0_7], %7 {strides = array<i32>} : memref<8x128xf32, #tpu.memory_space<vmem>>, vector<8x128xf32>,
    return
  }
  func.func @transform_0(%arg0: i32) -> (i32, i32) {
    %c0_i32 = arith.constant 0 : i32
    %c0_i32_0 = arith.constant 0 : i32
    return %arg0, %c0_i32 : i32, i32
  }
  func.func @transform_1(%arg0: i32) -> (i32, i32) {
    %c0_i32 = arith.constant 0 : i32
    %c0_i32_0 = arith.constant 0 : i32
    %c0_i32_1 = arith.constant 0 : i32
    return %c0_i32, %c0_i32_0 : i32, i32
  }
  func.func @transform_2(%arg0: i32) -> (i32, i32) {
    %c0_i32 = arith.constant 0 : i32
    %c0_i32_0 = arith.constant 0 : i32
    %c0_i32_1 = arith.constant 0 : i32
    return %c0_i32, %c0_i32_0 : i32, i32
  }
  func.func @transform_3(%arg0: i32) -> (i32, i32) {
    %c0_i32 = arith.constant 0 : i32
    %c0_i32_0 = arith.constant 0 : i32
    return %arg0, %c0_i32 : i32, i32
  }
}

</mosaic_0001>

<llo_original>
// kernel: nonneg_linear.1
$region0: #{nonneg_linear.1}
  #allocation0 [shape = 'u32[]', space=smem, size = 0x4, offset = 0x4, fixed_abs, tag = 'smem constant byte address 0x4 - core index']
  #allocation1 [shape = 'u32[72,128]{1,0:T(1,128)}', space=vmem, size = 0x9000, scoped, tag = 'internal scratch']
  %s0 = inlined_call_operand.hbm [shape: f32[8,32], index: 0, kind: input, shape index: {}]
  %s1 = inlined_call_operand.hbm [shape: f32[32,128], index: 1, kind: input, shape index: {}]
  %s2 = inlined_call_operand.vmem [shape: f32[1,128], index: 2, kind: input, shape index: {}]
  %s3 = inlined_call_operand.hbm [shape: f32[8,128], index: 3, kind: output, shape index: {}]
  %s4 = sld [smem:[#allocation0]]
  $region30: #{nonneg_linear.1} parent=0
    _
  %s6 = ssub.s32 1, %s4
  %s7 = scalar_select 0, %s6, %s4
  $region1: #{nonneg_linear.1} parent=0
    #allocation2 [shape = 'u8[4096]{0}', space=vmem, size = 0x1000, scoped, tag = 'input window, operand 0, single buffered']
    #allocation3 [shape = 's32[1]{0}', space=sflag, size = 0x4, scoped, tag = 'scoped memory for nonneg_linear.1']
    #allocation4 [shape = 's32[1]{0}', space=sflag, size = 0x4, scoped, tag = 'scoped memory for nonneg_linear.1']
    #allocation5 [shape = 'u8[16384]{0}', space=vmem, size = 0x4000, scoped, tag = 'input window, operand 1, single buffered']
    #allocation6 [shape = 's32[1]{0}', space=sflag, size = 0x4, scoped, tag = 'scoped memory for nonneg_linear.1']
    #allocation7 [shape = 'u8[4096]{0}', space=vmem, size = 0x1000, scoped, tag = 'output window, operand 0, single buffered']
    %8 = vsyncpa [#allocation3], 0
    %9 = vsyncpa [#allocation6], 0
    %10 = vsyncpa [#allocation4], 0
    // Predicated region
    $region2: #{nonneg_linear.1} parent=1 // pred_check
      _
    $region3: #{nonneg_linear.1} parent=1 // pred_check_branch
      %12 = sbr.rel (0) target = $region5
    $region4: #{nonneg_linear.1} parent=1 // pred_region
      %14 = vsyncadd [#allocation3], 0
      %s16 = sshll.u32 %s0, 4
      %s17 = int_to_ptr.hbm [resolvable:$true] %s16
      %s18 = sshll.u32 [#allocation2], 4
      %s19 = int_to_ptr.vmem [resolvable:$true] %s18
      %21 = dma.hbm_to_vmem [thread:$0]  %s17, 128, %s19, [#allocation3]
    $region5: #{nonneg_linear.1} parent=1 // pred_fallthru
      _
    // Predicated region
    $region6: #{nonneg_linear.1} parent=1 // pred_check
      _
    $region7: #{nonneg_linear.1} parent=1 // pred_check_branch
      %23 = sbr.rel (0) target = $region9
    $region8: #{nonneg_linear.1} parent=1 // pred_region
      %25 = vsyncadd [#allocation6], 0
      %s26 = sshll.u32 %s1, 4
      %s27 = int_to_ptr.hbm [resolvable:$true] %s26
      %s28 = sshll.u32 [#allocation5], 4
      %s29 = int_to_ptr.vmem [resolvable:$true] %s28
      %34 = dma.hbm_to_vmem [thread:$0]  %s27, 512, %s29, [#allocation6], 128, 128, 8
    $region9: #{nonneg_linear.1} parent=1 // pred_fallthru
      _
    // Predicated region
    $region10: #{nonneg_linear.1} parent=1 // pred_check
      _
    $region11: #{nonneg_linear.1} parent=1 // pred_check_branch
      %36 = sbr.rel (0) target = $region13
    $region12: #{nonneg_linear.1} parent=1 // pred_region
      _
    $region13: #{nonneg_linear.1} parent=1 // pred_fallthru
      _
    // Predicated region
    $region14: #{nonneg_linear.1} parent=1 // pred_check
      _
    $region15: #{nonneg_linear.1} parent=1 // pred_check_branch
      %38 = sbr.rel (0) target = $region17
    $region16: #{nonneg_linear.1} parent=1 // pred_region
      %40 = dma.done [#allocation3], 128
    $region17: #{nonneg_linear.1} parent=1 // pred_fallthru
      _
    // Predicated region
    $region18: #{nonneg_linear.1} parent=1 // pred_check
      _
    $region19: #{nonneg_linear.1} parent=1 // pred_check_branch
      %42 = sbr.rel (0) target = $region21
    $region20: #{nonneg_linear.1} parent=1 // pred_region
      %44 = dma.done [#allocation6], 512
    $region21: #{nonneg_linear.1} parent=1 // pred_fallthru
      _
    %v45 = vld [vmem:[#allocation5] sm:$0xff]
    %v46 = vld [vmem:[#allocation5 + $0x8] sm:$0xff]
    %v47 = vld [vmem:[#allocation5 + $0x10] sm:$0xff]
    %v48 = vld [vmem:[#allocation5 + $0x18] sm:$0xff]
    %v49 = vmax.f32 %v45, 0.0
    %v50 = vmax.f32 %v46, 0.0
    %v51 = vmax.f32 %v47, 0.0
    %v52 = vmax.f32 %v48, 0.0
    %v53 = vld [vmem:[#allocation2] sm:$0xff]
    %v54 = vld [vmem:[%s2] sm:$0x1]
    %v56 = vperm.slane %v54, 0
    %vm58 = vcmask 261120
    %v60 = vsel %vm58, %v53, 0
    %62 = vmatpush.msra.mxu0 0.0
    %63 = vmatpush.msra.mxu0 0.0
    %64 = vmatpush.msra.mxu0 0.0
    %65 = vmatpush.msra.mxu0 0.0
    %66 = vmatpush.msra.mxu0 0.0
    %67 = vmatpush.msra.mxu0 0.0
    %68 = vmatpush.msra.mxu0 0.0
    %69 = vmatpush.msra.mxu0 0.0
    %70 = vmatpush.msra.mxu0 0.0
    %71 = vmatpush.msra.mxu0 0.0
    %72 = vmatpush.msra.mxu0 0.0
    %73 = vmatpush.msra.mxu0 0.0
    %74 = vmatpush.msra.mxu0 %v52
    %75 = vmatpush.msra.mxu0 %v51
    %76 = vmatpush.msra.mxu0 %v50
    %77 = vmatpush.msra.mxu0 %v49
    %78 = vmatmul.f32.gmra.mxu0 %v60
    %v79 = vpop.f32.mrf.mxu0
    %v80 = vadd.f32 %v56, %v79
    %81 = vdwg.mxu0
    %82 = vst [vmem:[#allocation7] sm:$0xff] %v80
    // Predicated region
    $region22: #{nonneg_linear.1} parent=1 // pred_check
      _
    $region23: #{nonneg_linear.1} parent=1 // pred_check_branch
      %84 = sbr.rel (0) target = $region25
    $region24: #{nonneg_linear.1} parent=1 // pred_region
      %86 = vsyncadd [#allocation4], 0
      %s88 = sshll.u32 [#allocation7], 4
      %s89 = int_to_ptr.vmem [resolvable:$true] %s88
      %s90 = sshll.u32 %s3, 4
      %s91 = int_to_ptr.hbm [resolvable:$true] %s90
      %93 = dma.vmem_to_hbm [thread:$0]  %s89, 128, %s91, [#allocation4]
    $region25: #{nonneg_linear.1} parent=1 // pred_fallthru
      _
    // Predicated region
    $region26: #{nonneg_linear.1} parent=1 // pred_check
      _
    $region27: #{nonneg_linear.1} parent=1 // pred_check_branch
      %95 = sbr.rel (0) target = $region29
    $region28: #{nonneg_linear.1} parent=1 // pred_region
      %97 = dma.done [#allocation4], 128
    $region29: #{nonneg_linear.1} parent=1 // pred_fallthru
      _
    %98 = vsyncpa [#allocation3], 1
    %99 = vsyncpa [#allocation6], 1
    %100 = vsyncpa [#allocation4], 1

</llo_original>
